<compile_context>
chip_gen: v7x
topology: tpu7x:2x2x1
jax: 0.10.0
libtpu: 0.0.40
codegen_flags: <defaults>
</compile_context>

<pallas_src>
import functools

import jax
import jax.numpy as jnp
import numpy as np
from jax import lax
from jax.experimental import pallas as pl
from jax.experimental.pallas import tpu as pltpu


def receiver_predictor_kernel(xin_ref, w_in_ref, w1_ref, b1_ref, w2_ref, b2_ref,
                              merged_ref, *, half):
    """One batch tile: xin (Bt, Din_pad) -> merged (Bt, 128) slab.

    merged lanes [0:n_out)          = logits
    merged lanes [half:half+n_out)  = softmax(logits)
    """
    x = xin_ref[...]                                   # already in the matmul dtype

    # cat = [enc(x_0) | ... | enc(x_{n_xs-1}) | hidden] + per-slot encoder bias.
    # One MXU issue: w_in is block-diagonal (encoder weight per slot), identity for the
    # `hidden` pass-through, plus a bias row hit by the constant-1 column of xin.
    cat = jnp.dot(x, w_in_ref[...], preferred_element_type=jnp.float32)

    # to_prediction[0:2]: Linear(C -> H, lane-padded) + ReLU. Padded cols stay exactly 0.
    h1 = jnp.maximum(
        jnp.dot(cat.astype(w1_ref.dtype), w1_ref[...],
                preferred_element_type=jnp.float32) + b1_ref[...],
        0.0)

    # to_prediction[2]: Linear(H -> 128). W2/b2 are duplicated into lanes [0:n_out) and
    # [half:half+n_out); every other lane has weight 0 and bias -1e30 (exp -> exactly 0).
    out = jnp.dot(h1.astype(w2_ref.dtype), w2_ref[...],
                  preferred_element_type=jnp.float32) + b2_ref[...]

    # Exact softmax over the lane-dense padded row. Because the real logits appear in
    # both halves, the full-row sum is exactly 2x the true denominator.
    m = jnp.max(out, axis=-1, keepdims=True)
    e = jnp.exp(out - m)
    probs = e / (0.5 * jnp.sum(e, axis=-1, keepdims=True))   # exact normalization

    # Merge logits (low half) and probs (high half) -> one lane-dense store.
    lanes = lax.broadcasted_iota(jnp.int32, out.shape, 1)
    merged_ref[...] = jnp.where(lanes < half, out, probs)


def _round_up(x, m):
    return ((x + m - 1) // m) * m


def prepare_params(params, *, n_xs, F, H, n_out, matmul_dtype=jnp.float32,
                   out_pad=128, neg_fill=-1e30):
    """One-time parameter preprocessing (model-setup time, not per call)."""
    C = (n_xs + 1) * H                       # concat width
    Din = n_xs * F + H                       # packed input row width (before padding)
    din_pad = _round_up(Din + 1, 128)        # +1 for the constant-1 bias column
    c_pad = _round_up(C, 128)
    h_pad = _round_up(H, 128)
    half = out_pad // 2
    assert n_out <= half

    w_enc, b_enc = params["w_enc"], params["b_enc"]

    # Block-diagonal encoder weight, identity pass-through for `hidden`, bias row at Din.
    w_in = jnp.zeros((din_pad, c_pad), jnp.float32)
    for s in range(n_xs):
        w_in = w_in.at[s * F:(s + 1) * F, s * H:(s + 1) * H].set(w_enc)
    w_in = w_in.at[n_xs * F:n_xs * F + H, n_xs * H:C].set(jnp.eye(H, dtype=jnp.float32))
    b_cat = jnp.concatenate([jnp.tile(b_enc.reshape(1, H), (1, n_xs)),
                             jnp.zeros((1, H), jnp.float32)], axis=1)
    w_in = w_in.at[Din, :C].set(b_cat[0])

    # Hidden layer padded to lane width (zero padding -> padded cols stay 0 after ReLU).
    w1 = jnp.zeros((c_pad, h_pad), jnp.float32).at[:C, :H].set(params["w1_cat"])
    b1 = jnp.zeros((1, h_pad), jnp.float32).at[:, :H].set(params["b1"])

    # Output head: W2/b2 duplicated into both lane halves; -1e30 bias everywhere else.
    w2 = jnp.zeros((h_pad, out_pad), jnp.float32)
    w2 = w2.at[:H, :n_out].set(params["w2"])
    w2 = w2.at[:H, half:half + n_out].set(params["w2"])
    b2 = jnp.full((1, out_pad), neg_fill, jnp.float32)
    b2 = b2.at[:, :n_out].set(params["b2"])
    b2 = b2.at[:, half:half + n_out].set(params["b2"])

    # Pre-cast the matmul operands ONCE (bf16 halves weight DMA); biases stay f32.
    return {"w_in": w_in.astype(matmul_dtype), "w1": w1.astype(matmul_dtype),
            "w2": w2.astype(matmul_dtype), "b1": b1, "b2": b2,
            "n_out": n_out, "half": half}


def receiver_predictor_forward(xs, hidden, fp, *, block_b=None):
    """xs: (n_xs, B, F) f32; hidden: (B, H) f32. Returns (out, probs), each (B, n_out)."""
    n_xs, B, F = xs.shape
    H = hidden.shape[1]
    Din = n_xs * F + H
    matmul_dtype = fp["w_in"].dtype
    din_pad, c_pad = fp["w_in"].shape
    h_pad = fp["w1"].shape[1]
    out_pad = fp["w2"].shape[1]
    n_out, half = fp["n_out"], fp["half"]

    # Big batch tiles: a single grid step for small B; cap at 512 rows per tile.
    if block_b is None:
        block_b = B if B <= 512 else 512
    assert B % block_b == 0, "demo assumes B divisible by the batch tile"
    grid = (B // block_b,)
    # Only request megacore (v7x) sharding when each per-TC tile carries real work.
    semantics = ("parallel",) if (grid[0] > 1 and block_b >= 256) else ("arbitrary",)

    # Layout plumbing only: pack [x_0 | .. | x_{n_xs-1} | hidden | 1 | 0-pad] per batch
    # row (lane-aligned to 128) and pre-cast activations to the matmul dtype.
    xin = jnp.concatenate(
        [jnp.transpose(xs, (1, 0, 2)).reshape(B, n_xs * F),
         hidden,
         jnp.ones((B, 1), jnp.float32),
         jnp.zeros((B, din_pad - Din - 1), jnp.float32)],
        axis=1).astype(matmul_dtype)

    const = lambda i: (0, 0)     # weights/biases: same block every grid step (no re-DMA)
    tiled = lambda i: (i, 0)     # activations/output: tiled over the batch axis

    merged = pl.pallas_call(
        functools.partial(receiver_predictor_kernel, half=half),
        out_shape=jax.ShapeDtypeStruct((B, out_pad), jnp.float32),
        grid=grid,
        in_specs=[
            pl.BlockSpec((block_b, din_pad), tiled),   # packed inputs
            pl.BlockSpec((din_pad, c_pad), const),     # block-diag encoder weight (+bias row)
            pl.BlockSpec((c_pad, h_pad), const),       # w1 (lane-padded)
            pl.BlockSpec((1, h_pad), const),           # b1 (lane-padded, f32)
            pl.BlockSpec((h_pad, out_pad), const),     # w2 (duplicated lane halves)
            pl.BlockSpec((1, out_pad), const),         # b2 (duplicated, -1e30 padding, f32)
        ],
        out_specs=pl.BlockSpec((block_b, out_pad), tiled),
        compiler_params=pltpu.CompilerParams(dimension_semantics=semantics),
    )(xin, fp["w_in"], fp["w1"], fp["b1"], fp["w2"], fp["b2"])

    return merged[:, :n_out], merged[:, half:half + n_out]


def reference_forward(xs, hidden, params):
    """Pure-JAX reference replicating the PyTorch module literally (unfused params)."""
    hidden_states = [xs[i] @ params["w_enc"] + params["b_enc"] for i in range(xs.shape[0])]
    hidden_states.append(hidden)
    cat = jnp.concatenate(hidden_states, axis=1)
    h1 = jnp.maximum(cat @ params["w1_cat"] + params["b1"], 0.0)
    out = h1 @ params["w2"] + params["b2"]
    return out, jax.nn.softmax(out, axis=-1)


if __name__ == "__main__":
    n_xs, B, F, H = 3, 16, 16, 32      # small shapes; single grid step (block_b = B)
    n_symbols, msg_len = 3, 5          # constructor args; unused in forward
    n_out = n_xs

    key = jax.random.PRNGKey(0)
    k = jax.random.split(key, 8)
    xs = jax.random.normal(k[0], (n_xs, B, F), jnp.float32)
    hidden = jax.random.normal(k[1], (B, H), jnp.float32)   # second forward argument

    params = {
        "w_enc": 0.1 * jax.random.normal(k[2], (F, H), jnp.float32),     # feature_encoder
        "b_enc": 0.1 * jax.random.normal(k[3], (1, H), jnp.float32),
        "w1_cat": 0.1 * jax.random.normal(k[4], (H * (n_xs + 1), H), jnp.float32),
        "b1": 0.1 * jax.random.normal(k[5], (1, H), jnp.float32),
        "w2": 0.1 * jax.random.normal(k[6], (H, n_out), jnp.float32),
        "b2": 0.1 * jax.random.normal(k[7], (1, n_out), jnp.float32),
    }

    ref_out, ref_probs = reference_forward(xs, hidden, params)

    # f32 matmul path.
    fused_f32 = prepare_params(params, n_xs=n_xs, F=F, H=H, n_out=n_out,
                               matmul_dtype=jnp.float32)
    out, probs = receiver_predictor_forward(xs, hidden, fused_f32)
    jax.block_until_ready((out, probs))

    assert out.shape == (B, n_out) and probs.shape == (B, n_out)
    # Tolerance covers possible MXU f32-pass decomposition on hardware.
    assert np.allclose(np.asarray(out), np.asarray(ref_out), atol=1e-3, rtol=1e-3)
    assert np.allclose(np.asarray(probs), np.asarray(ref_probs), atol=1e-3, rtol=1e-3)
    # Exact in-kernel normalization: probs sum to 1 up to f32 rounding.
    assert np.allclose(np.asarray(probs).sum(-1), 1.0, atol=1e-5)

    # bf16-operand matmul path (halves weight/activation DMA; f32 accumulation and
    # f32 elementwise everywhere, so it is valid on v5e as well as v6e/v7x).
    fused_bf16 = prepare_params(params, n_xs=n_xs, F=F, H=H, n_out=n_out,
                                matmul_dtype=jnp.bfloat16)
    out16, probs16 = receiver_predictor_forward(xs, hidden, fused_bf16)
    jax.block_until_ready((out16, probs16))
    assert np.allclose(np.asarray(out16), np.asarray(ref_out), atol=5e-2, rtol=5e-2)
    assert np.allclose(np.asarray(probs16), np.asarray(ref_probs), atol=5e-2, rtol=5e-2)
    assert np.allclose(np.asarray(probs16).sum(-1), 1.0, atol=1e-5)

    print("KERNEL_OK")
</pallas_src>

<mosaic_0001>
module attributes {stable_mosaic.version = 11 : i64} {
  func.func @receiver_predictor_kernel(%arg0: i32, %arg1: memref<16x128xf32, #tpu.memory_space<vmem>>, %arg2: memref<128x128xf32, #tpu.memory_space<vmem>>, %arg3: memref<128x128xf32, #tpu.memory_space<vmem>>, %arg4: memref<1x128xf32, #tpu.memory_space<vmem>>, %arg5: memref<128x128xf32, #tpu.memory_space<vmem>>, %arg6: memref<1x128xf32, #tpu.memory_space<vmem>>, %arg7: memref<16x128xf32, #tpu.memory_space<vmem>>) attributes {dimension_semantics = [#tpu.dimension_semantics<arbitrary>], iteration_bounds = array<i64: 1>, scalar_prefetch = 0 : i64, scratch_operands = 0 : i64, tpu.core_type = #tpu.core_type<tc>, window_params = [{transform_indices = @transform_0, window_bounds = array<i64: 16, 128>}, {pipeline_mode = #tpu.pipeline_mode<synchronous>, transform_indices = @transform_1, window_bounds = array<i64: 128, 128>}, {pipeline_mode = #tpu.pipeline_mode<synchronous>, transform_indices = @transform_2, window_bounds = array<i64: 128, 128>}, {pipeline_mode = #tpu.pipeline_mode<synchronous>, transform_indices = @transform_3, window_bounds = array<i64: 1, 128>}, {pipeline_mode = #tpu.pipeline_mode<synchronous>, transform_indices = @transform_4, window_bounds = array<i64: 128, 128>}, {pipeline_mode = #tpu.pipeline_mode<synchronous>, transform_indices = @transform_5, window_bounds = array<i64: 1, 128>}, {transform_indices = @transform_6, window_bounds = array<i64: 16, 128>}]} {
    %c0 = arith.constant 0 : index
    %c0_0 = arith.constant 0 : index
    %0 = vector.load %arg1[%c0, %c0_0] : memref<16x128xf32, #tpu.memory_space<vmem>>, vector<16x128xf32>
    %c0_1 = arith.constant 0 : index
    %c0_2 = arith.constant 0 : index
    %1 = vector.load %arg2[%c0_1, %c0_2] : memref<128x128xf32, #tpu.memory_space<vmem>>, vector<128x128xf32>
    %cst = arith.constant dense<0.000000e+00> : vector<16x128xf32>
    %2 = tpu.matmul %0, %1, %cst {dimension_numbers = #tpu.dot_dimension_numbers<[1], [0], [0], [1], [0, 0, 1, 1], [], []>} : vector<16x128xf32>, vector<128x128xf32>, vector<16x128xf32> -> vector<16x128xf32>
    %c0_3 = arith.constant 0 : index
    %c0_4 = arith.constant 0 : index
    %3 = vector.load %arg3[%c0_3, %c0_4] : memref<128x128xf32, #tpu.memory_space<vmem>>, vector<128x128xf32>
    %cst_5 = arith.constant dense<0.000000e+00> : vector<16x128xf32>
    %4 = tpu.matmul %2, %3, %cst_5 {dimension_numbers = #tpu.dot_dimension_numbers<[1], [0], [0], [1], [0, 0, 1, 1], [], []>} : vector<16x128xf32>, vector<128x128xf32>, vector<16x128xf32> -> vector<16x128xf32>
    %c0_6 = arith.constant 0 : index
    %c0_7 = arith.constant 0 : index
    %5 = vector.load %arg4[%c0_6, %c0_7] : memref<1x128xf32, #tpu.memory_space<vmem>>, vector<1x128xf32>
    %6 = vector.broadcast %5 : vector<1x128xf32> to vector<16x128xf32>
    %7 = arith.addf %4, %6 : vector<16x128xf32>
    %cst_8 = arith.constant 0.000000e+00 : f32
    %8 = vector.broadcast %cst_8 : f32 to vector<16x128xf32>
    %9 = arith.maximumf %7, %8 : vector<16x128xf32>
    %c0_9 = arith.constant 0 : index
    %c0_10 = arith.constant 0 : index
    %10 = vector.load %arg5[%c0_9, %c0_10] : memref<128x128xf32, #tpu.memory_space<vmem>>, vector<128x128xf32>
    %cst_11 = arith.constant dense<0.000000e+00> : vector<16x128xf32>
    %11 = tpu.matmul %9, %10, %cst_11 {dimension_numbers = #tpu.dot_dimension_numbers<[1], [0], [0], [1], [0, 0, 1, 1], [], []>} : vector<16x128xf32>, vector<128x128xf32>, vector<16x128xf32> -> vector<16x128xf32>
    %c0_12 = arith.constant 0 : index
    %c0_13 = arith.constant 0 : index
    %12 = vector.load %arg6[%c0_12, %c0_13] : memref<1x128xf32, #tpu.memory_space<vmem>>, vector<1x128xf32>
    %13 = vector.broadcast %12 : vector<1x128xf32> to vector<16x128xf32>
    %14 = arith.addf %11, %13 : vector<16x128xf32>
    %cst_14 = arith.constant dense<0xFF800000> : vector<16xf32>
    %15 = vector.multi_reduction <maximumf>, %14, %cst_14 [1] : vector<16x128xf32> to vector<16xf32>
    %16 = vector.shape_cast %15 : vector<16xf32> to vector<16x1xf32>
    %17 = vector.broadcast %16 : vector<16x1xf32> to vector<16x128xf32>
    %18 = arith.subf %14, %17 : vector<16x128xf32>
    %19 = math.exp %18 : vector<16x128xf32>
    %cst_15 = arith.constant dense<0.000000e+00> : vector<16xf32>
    %20 = vector.multi_reduction <add>, %19, %cst_15 [1] : vector<16x128xf32> to vector<16xf32>
    %21 = vector.shape_cast %20 : vector<16xf32> to vector<16x1xf32>
    %cst_16 = arith.constant 5.000000e-01 : f32
    %22 = vector.broadcast %cst_16 : f32 to vector<16x1xf32>
    %23 = arith.mulf %22, %21 : vector<16x1xf32>
    %24 = vector.broadcast %23 : vector<16x1xf32> to vector<16x128xf32>
    %25 = arith.divf %19, %24 : vector<16x128xf32>
    %26 = tpu.iota {dimensions = array<i32: 1>} : vector<16x128xi32>
    %c64_i32 = arith.constant 64 : i32
    %27 = vector.broadcast %c64_i32 : i32 to vector<16x128xi32>
    %28 = arith.cmpi slt, %26, %27 : vector<16x128xi32>
    %29 = arith.select %28, %14, %25 : vector<16x128xi1>, vector<16x128xf32>
    %c0_17 = arith.constant 0 : index
    %c0_18 = arith.constant 0 : index
    %30 = vector.load %arg7[%c0_17, %c0_18] : memref<16x128xf32, #tpu.memory_space<vmem>>, vector<16x128xf32>
    tpu.vector_store %arg7[%c0_17, %c0_18], %29 {strides = array<i32>} : memref<16x128xf32, #tpu.memory_space<vmem>>, vector<16x128xf32>,
    return
  }
  func.func @transform_0(%arg0: i32) -> (i32, i32) {
    %c0_i32 = arith.constant 0 : i32
    %c0_i32_0 = arith.constant 0 : i32
    return %arg0, %c0_i32 : i32, i32
  }
  func.func @transform_1(%arg0: i32) -> (i32, i32) {
    %c0_i32 = arith.constant 0 : i32
    %c0_i32_0 = arith.constant 0 : i32
    %c0_i32_1 = arith.constant 0 : i32
    return %c0_i32, %c0_i32_0 : i32, i32
  }
  func.func @transform_2(%arg0: i32) -> (i32, i32) {
    %c0_i32 = arith.constant 0 : i32
    %c0_i32_0 = arith.constant 0 : i32
    %c0_i32_1 = arith.constant 0 : i32
    return %c0_i32, %c0_i32_0 : i32, i32
  }
  func.func @transform_3(%arg0: i32) -> (i32, i32) {
    %c0_i32 = arith.constant 0 : i32
    %c0_i32_0 = arith.constant 0 : i32
    %c0_i32_1 = arith.constant 0 : i32
    return %c0_i32, %c0_i32_0 : i32, i32
  }
  func.func @transform_4(%arg0: i32) -> (i32, i32) {
    %c0_i32 = arith.constant 0 : i32
    %c0_i32_0 = arith.constant 0 : i32
    %c0_i32_1 = arith.constant 0 : i32
    return %c0_i32, %c0_i32_0 : i32, i32
  }
  func.func @transform_5(%arg0: i32) -> (i32, i32) {
    %c0_i32 = arith.constant 0 : i32
    %c0_i32_0 = arith.constant 0 : i32
    %c0_i32_1 = arith.constant 0 : i32
    return %c0_i32, %c0_i32_0 : i32, i32
  }
  func.func @transform_6(%arg0: i32) -> (i32, i32) {
    %c0_i32 = arith.constant 0 : i32
    %c0_i32_0 = arith.constant 0 : i32
    return %arg0, %c0_i32 : i32, i32
  }
}

</mosaic_0001>

<llo_original>
// kernel: tpu_custom_call.1
$region0: #{tpu_custom_call.1}
  #allocation0 [shape = 'u32[]', space=smem, size = 0x4, offset = 0x4, fixed_abs, tag = 'smem constant byte address 0x4 - core index']
  #allocation1 [shape = 'u32[144,128]{1,0:T(1,128)}', space=vmem, size = 0x12000, scoped, tag = 'internal scratch']
  %s0 = inlined_call_operand.hbm [shape: f32[16,128], index: 0, kind: input, shape index: {}]
  %s1 = inlined_call_operand.hbm [shape: f32[128,128], index: 1, kind: input, shape index: {}]
  %s2 = inlined_call_operand.hbm [shape: f32[128,128], index: 2, kind: input, shape index: {}]
  %s3 = inlined_call_operand.vmem [shape: f32[1,128], index: 3, kind: input, shape index: {}]
  %s4 = inlined_call_operand.hbm [shape: f32[128,128], index: 4, kind: input, shape index: {}]
  %s5 = inlined_call_operand.vmem [shape: f32[1,128], index: 5, kind: input, shape index: {}]
  %s6 = inlined_call_operand.hbm [shape: f32[16,128], index: 6, kind: output, shape index: {}]
  %s7 = sld [smem:[#allocation0]]
  $region50: #{tpu_custom_call.1} parent=0
    _
  %s9 = ssub.s32 1, %s7
  %s10 = scalar_select 0, %s9, %s7
  $region1: #{tpu_custom_call.1} parent=0
    #allocation2 [shape = 'u8[8192]{0}', space=vmem, size = 0x2000, scoped, tag = 'input window, operand 0, single buffered']
    #allocation3 [shape = 's32[1]{0}', space=sflag, size = 0x4, scoped, tag = 'scoped memory for tpu_custom_call.1']
    #allocation4 [shape = 's32[1]{0}', space=sflag, size = 0x4, scoped, tag = 'scoped memory for tpu_custom_call.1']
    #allocation5 [shape = 'u8[65536]{0}', space=vmem, size = 0x10000, scoped, tag = 'input window, operand 1, single buffered']
    #allocation6 [shape = 's32[1]{0}', space=sflag, size = 0x4, scoped, tag = 'scoped memory for tpu_custom_call.1']
    #allocation7 [shape = 'u8[65536]{0}', space=vmem, size = 0x10000, scoped, tag = 'input window, operand 2, single buffered']
    #allocation8 [shape = 'u8[65536]{0}', space=vmem, size = 0x10000, scoped, tag = 'input window, operand 4, single buffered']
    #allocation9 [shape = 's32[1]{0}', space=sflag, size = 0x4, scoped, tag = 'scoped memory for tpu_custom_call.1']
    #allocation10 [shape = 'u8[8192]{0}', space=vmem, size = 0x2000, scoped, tag = 'output window, operand 0, single buffered']
    %11 = vsyncpa [#allocation3], 0
    %12 = vsyncpa [#allocation6], 0
    %13 = vsyncpa [#allocation9], 0
    %14 = vsyncpa [#allocation4], 0
    // Predicated region
    $region2: #{tpu_custom_call.1} parent=1 // pred_check
      _
    $region3: #{tpu_custom_call.1} parent=1 // pred_check_branch
      %16 = sbr.rel (0) target = $region5
    $region4: #{tpu_custom_call.1} parent=1 // pred_region
      %s18 = ssub.s32 256, 256
      %19 = vsyncadd [#allocation3], %s18
      %s20 = sshll.u32 [#allocation2], 4
      %s21 = int_to_ptr.vmem [resolvable:$true] %s20
      %26 = dma.hbm_to_vmem [thread:$0]  %s0, 256, %s21, [#allocation3], 128, 128, 8
    $region5: #{tpu_custom_call.1} parent=1 // pred_fallthru
      _
    // Predicated region
    $region6: #{tpu_custom_call.1} parent=1 // pred_check
      _
    $region7: #{tpu_custom_call.1} parent=1 // pred_check_branch
      %28 = sbr.rel (0) target = $region9
    $region8: #{tpu_custom_call.1} parent=1 // pred_region
      %s30 = ssub.s32 2048, 2048
      %31 = vsyncadd [#allocation6], %s30
      %s32 = sshll.u32 [#allocation5], 4
      %s33 = int_to_ptr.vmem [resolvable:$true] %s32
      %38 = dma.hbm_to_vmem [thread:$0]  %s1, 2048, %s33, [#allocation6], 128, 128, 8
    $region9: #{tpu_custom_call.1} parent=1 // pred_fallthru
      _
    // Predicated region
    $region10: #{tpu_custom_call.1} parent=1 // pred_check
      _
    $region11: #{tpu_custom_call.1} parent=1 // pred_check_branch
      %40 = sbr.rel (0) target = $region13
    $region12: #{tpu_custom_call.1} parent=1 // pred_region
      %s42 = ssub.s32 2048, 2048
      %43 = vsyncadd [#allocation6], %s42
      %s44 = sshll.u32 [#allocation7], 4
      %s45 = int_to_ptr.vmem [resolvable:$true] %s44
      %50 = dma.hbm_to_vmem [thread:$0]  %s2, 2048, %s45, [#allocation6], 128, 128, 8
    $region13: #{tpu_custom_call.1} parent=1 // pred_fallthru
      _
    // Predicated region
    $region14: #{tpu_custom_call.1} parent=1 // pred_check
      _
    $region15: #{tpu_custom_call.1} parent=1 // pred_check_branch
      %52 = sbr.rel (0) target = $region17
    $region16: #{tpu_custom_call.1} parent=1 // pred_region
      _
    $region17: #{tpu_custom_call.1} parent=1 // pred_fallthru
      _
    // Predicated region
    $region18: #{tpu_custom_call.1} parent=1 // pred_check
      _
    $region19: #{tpu_custom_call.1} parent=1 // pred_check_branch
      %54 = sbr.rel (0) target = $region21
    $region20: #{tpu_custom_call.1} parent=1 // pred_region
      %s56 = ssub.s32 2048, 2048
      %57 = vsyncadd [#allocation9], %s56
      %s58 = sshll.u32 [#allocation8], 4
      %s59 = int_to_ptr.vmem [resolvable:$true] %s58
      %64 = dma.hbm_to_vmem [thread:$0]  %s4, 2048, %s59, [#allocation9], 128, 128, 8
    $region21: #{tpu_custom_call.1} parent=1 // pred_fallthru
      _
    // Predicated region
    $region22: #{tpu_custom_call.1} parent=1 // pred_check
      _
    $region23: #{tpu_custom_call.1} parent=1 // pred_check_branch
      %66 = sbr.rel (0) target = $region25
    $region24: #{tpu_custom_call.1} parent=1 // pred_region
      _
    $region25: #{tpu_custom_call.1} parent=1 // pred_fallthru
      _
    // Predicated region
    $region26: #{tpu_custom_call.1} parent=1 // pred_check
      _
    $region27: #{tpu_custom_call.1} parent=1 // pred_check_branch
      %68 = sbr.rel (0) target = $region29
    $region28: #{tpu_custom_call.1} parent=1 // pred_region
      %69 = dma.done [#allocation3], 256
    $region29: #{tpu_custom_call.1} parent=1 // pred_fallthru
      _
    // Predicated region
    $region30: #{tpu_custom_call.1} parent=1 // pred_check
      _
    $region31: #{tpu_custom_call.1} parent=1 // pred_check_branch
      %71 = sbr.rel (0) target = $region33
    $region32: #{tpu_custom_call.1} parent=1 // pred_region
      %72 = dma.done [#allocation6], 2048
    $region33: #{tpu_custom_call.1} parent=1 // pred_fallthru
      _
    // Predicated region
    $region34: #{tpu_custom_call.1} parent=1 // pred_check
      _
    $region35: #{tpu_custom_call.1} parent=1 // pred_check_branch
      %74 = sbr.rel (0) target = $region37
    $region36: #{tpu_custom_call.1} parent=1 // pred_region
      %75 = dma.done [#allocation6], 2048
    $region37: #{tpu_custom_call.1} parent=1 // pred_fallthru
      _
    // Predicated region
    $region38: #{tpu_custom_call.1} parent=1 // pred_check
      _
    $region39: #{tpu_custom_call.1} parent=1 // pred_check_branch
      %77 = sbr.rel (0) target = $region41
    $region40: #{tpu_custom_call.1} parent=1 // pred_region
      %78 = dma.done [#allocation9], 2048
    $region41: #{tpu_custom_call.1} parent=1 // pred_fallthru
      _
    %v79 = vld [vmem:[#allocation2] sm:$0xff]
    %v80 = vld [vmem:[#allocation2 + $0x8] sm:$0xff]
    %v81 = vld [vmem:[#allocation5] sm:$0xff]
    %v82 = vld [vmem:[#allocation5 + $0x8] sm:$0xff]
    %v83 = vld [vmem:[#allocation5 + $0x10] sm:$0xff]
    %v84 = vld [vmem:[#allocation5 + $0x18] sm:$0xff]
    %v85 = vld [vmem:[#allocation5 + $0x20] sm:$0xff]
    %v86 = vld [vmem:[#allocation5 + $0x28] sm:$0xff]
    %v87 = vld [vmem:[#allocation5 + $0x30] sm:$0xff]
    %v88 = vld [vmem:[#allocation5 + $0x38] sm:$0xff]
    %v89 = vld [vmem:[#allocation5 + $0x40] sm:$0xff]
    %v90 = vld [vmem:[#allocation5 + $0x48] sm:$0xff]
    %v91 = vld [vmem:[#allocation5 + $0x50] sm:$0xff]
    %v92 = vld [vmem:[#allocation5 + $0x58] sm:$0xff]
    %v93 = vld [vmem:[#allocation5 + $0x60] sm:$0xff]
    %v94 = vld [vmem:[#allocation5 + $0x68] sm:$0xff]
    %v95 = vld [vmem:[#allocation5 + $0x70] sm:$0xff]
    %v96 = vld [vmem:[#allocation5 + $0x78] sm:$0xff]
    %97 = vmatprep.subr.mxu0 0.0
    %98 = vmatpush1.msra.mxu0 %v81
    %99 = vmatprep.subr.mxu0 0.0
    %100 = vmatpush1.msra.mxu0 %v82
    %101 = vmatprep.subr.mxu0 0.0
    %102 = vmatpush1.msra.mxu0 %v83
    %103 = vmatprep.subr.mxu0 0.0
    %104 = vmatpush1.msra.mxu0 %v84
    %105 = vmatprep.subr.mxu0 0.0
    %106 = vmatpush1.msra.mxu0 %v85
    %107 = vmatprep.subr.mxu0 0.0
    %108 = vmatpush1.msra.mxu0 %v86
    %109 = vmatprep.subr.mxu0 0.0
    %110 = vmatpush1.msra.mxu0 %v87
    %111 = vmatprep.subr.mxu0 0.0
    %112 = vmatpush1.msra.mxu0 %v88
    %113 = vmatprep.subr.mxu0 0.0
    %114 = vmatpush1.msra.mxu0 %v89
    %115 = vmatprep.subr.mxu0 0.0
    %116 = vmatpush1.msra.mxu0 %v90
    %117 = vmatprep.subr.mxu0 0.0
    %118 = vmatpush1.msra.mxu0 %v91
    %119 = vmatprep.subr.mxu0 0.0
    %120 = vmatpush1.msra.mxu0 %v92
    %121 = vmatprep.subr.mxu0 0.0
    %122 = vmatpush1.msra.mxu0 %v93
    %123 = vmatprep.subr.mxu0 0.0
    %124 = vmatpush1.msra.mxu0 %v94
    %125 = vmatprep.subr.mxu0 0.0
    %126 = vmatpush1.msra.mxu0 %v95
    %127 = vmatprep.subr.mxu0 0.0
    %128 = vmatpush1.msra.mxu0 %v96
    %129 = vmatprep.subr.mxu0 0.0
    %130 = vmatpush1.msra.mxu0 0.0
    %131 = vmatprep.subr.mxu0 0.0
    %132 = vmatpush1.msra.mxu0 0.0
    %133 = vmatprep.subr.mxu0 0.0
    %134 = vmatpush1.msra.mxu0 0.0
    %135 = vmatprep.subr.mxu0 0.0
    %136 = vmatpush1.msra.mxu0 0.0
    %137 = vmatprep.subr.mxu0 0.0
    %138 = vmatpush1.msra.mxu0 0.0
    %139 = vmatprep.subr.mxu0 0.0
    %140 = vmatpush1.msra.mxu0 0.0
    %141 = vmatprep.subr.mxu0 0.0
    %142 = vmatpush1.msra.mxu0 0.0
    %143 = vmatprep.subr.mxu0 0.0
    %144 = vmatpush1.msra.mxu0 0.0
    %145 = vmatprep.subr.mxu0 0.0
    %146 = vmatpush1.msra.mxu0 0.0
    %147 = vmatprep.subr.mxu0 0.0
    %148 = vmatpush1.msra.mxu0 0.0
    %149 = vmatprep.subr.mxu0 0.0
    %150 = vmatpush1.msra.mxu0 0.0
    %151 = vmatprep.subr.mxu0 0.0
    %152 = vmatpush1.msra.mxu0 0.0
    %153 = vmatprep.subr.mxu0 0.0
    %154 = vmatpush1.msra.mxu0 0.0
    %155 = vmatprep.subr.mxu0 0.0
    %156 = vmatpush1.msra.mxu0 0.0
    %157 = vmatprep.subr.mxu0 0.0
    %158 = vmatpush1.msra.mxu0 0.0
    %159 = vmatprep.subr.mxu0 0.0
    %160 = vmatpush1.msra.mxu0 0.0
    %161 = vmatprep.mubr.f32.mxu0 0.0
    %162 = vmatmul.mubr.f32.gmra.mrb[0].mxu0 %v79
    %v163 = vpop.f32.mrb[0].mxu0
    %v164 = vadd.f32 0.0, %v163
    %v165 = vpop.f32.mrb[0].mxu0
    %166 = vmatprep.mubr.f32.mxu0 0.0
    %167 = vmatmul.mubr.f32.gmra.mrb[0].mxu0 %v80
    %v168 = vpop.f32.mrb[0].mxu0
    %v169 = vadd.f32 0.0, %v168
    %v170 = vpop.f32.mrb[0].mxu0
    %171 = vdwg.mxu0
    %v172 = vld [vmem:[#allocation7] sm:$0xff]
    %v173 = vld [vmem:[#allocation7 + $0x8] sm:$0xff]
    %v174 = vld [vmem:[#allocation7 + $0x10] sm:$0xff]
    %v175 = vld [vmem:[#allocation7 + $0x18] sm:$0xff]
    %v176 = vld [vmem:[#allocation7 + $0x20] sm:$0xff]
    %v177 = vld [vmem:[#allocation7 + $0x28] sm:$0xff]
    %v178 = vld [vmem:[#allocation7 + $0x30] sm:$0xff]
    %v179 = vld [vmem:[#allocation7 + $0x38] sm:$0xff]
    %v180 = vld [vmem:[#allocation7 + $0x40] sm:$0xff]
    %v181 = vld [vmem:[#allocation7 + $0x48] sm:$0xff]
    %v182 = vld [vmem:[#allocation7 + $0x50] sm:$0xff]
    %v183 = vld [vmem:[#allocation7 + $0x58] sm:$0xff]
    %v184 = vld [vmem:[#allocation7 + $0x60] sm:$0xff]
    %v185 = vld [vmem:[#allocation7 + $0x68] sm:$0xff]
    %v186 = vld [vmem:[#allocation7 + $0x70] sm:$0xff]
    %v187 = vld [vmem:[#allocation7 + $0x78] sm:$0xff]
    %v188 = vld [vmem:[%s3] sm:$0x1]
    %v190 = vlaneseq
    %v191 = vshrl.u32 %v190, 7
    %v192 = vsub.s32 0, %v191
    %v193 = vrot.slane %v188, %v192
    %195 = vmatprep.subr.mxu0 0.0
    %196 = vmatpush1.msra.mxu0 %v172
    %197 = vmatprep.subr.mxu0 0.0
    %198 = vmatpush1.msra.mxu0 %v173
    %199 = vmatprep.subr.mxu0 0.0
    %200 = vmatpush1.msra.mxu0 %v174
    %201 = vmatprep.subr.mxu0 0.0
    %202 = vmatpush1.msra.mxu0 %v175
    %203 = vmatprep.subr.mxu0 0.0
    %204 = vmatpush1.msra.mxu0 %v176
    %205 = vmatprep.subr.mxu0 0.0
    %206 = vmatpush1.msra.mxu0 %v177
    %207 = vmatprep.subr.mxu0 0.0
    %208 = vmatpush1.msra.mxu0 %v178
    %209 = vmatprep.subr.mxu0 0.0
    %210 = vmatpush1.msra.mxu0 %v179
    %211 = vmatprep.subr.mxu0 0.0
    %212 = vmatpush1.msra.mxu0 %v180
    %213 = vmatprep.subr.mxu0 0.0
    %214 = vmatpush1.msra.mxu0 %v181
    %215 = vmatprep.subr.mxu0 0.0
    %216 = vmatpush1.msra.mxu0 %v182
    %217 = vmatprep.subr.mxu0 0.0
    %218 = vmatpush1.msra.mxu0 %v183
    %219 = vmatprep.subr.mxu0 0.0
    %220 = vmatpush1.msra.mxu0 %v184
    %221 = vmatprep.subr.mxu0 0.0
    %222 = vmatpush1.msra.mxu0 %v185
    %223 = vmatprep.subr.mxu0 0.0
    %224 = vmatpush1.msra.mxu0 %v186
    %225 = vmatprep.subr.mxu0 0.0
    %226 = vmatpush1.msra.mxu0 %v187
    %227 = vmatprep.subr.mxu0 0.0
    %228 = vmatpush1.msra.mxu0 0.0
    %229 = vmatprep.subr.mxu0 0.0
    %230 = vmatpush1.msra.mxu0 0.0
    %231 = vmatprep.subr.mxu0 0.0
    %232 = vmatpush1.msra.mxu0 0.0
    %233 = vmatprep.subr.mxu0 0.0
    %234 = vmatpush1.msra.mxu0 0.0
    %235 = vmatprep.subr.mxu0 0.0
    %236 = vmatpush1.msra.mxu0 0.0
    %237 = vmatprep.subr.mxu0 0.0
    %238 = vmatpush1.msra.mxu0 0.0
    %239 = vmatprep.subr.mxu0 0.0
    %240 = vmatpush1.msra.mxu0 0.0
    %241 = vmatprep.subr.mxu0 0.0
    %242 = vmatpush1.msra.mxu0 0.0
    %243 = vmatprep.subr.mxu0 0.0
    %244 = vmatpush1.msra.mxu0 0.0
    %245 = vmatprep.subr.mxu0 0.0
    %246 = vmatpush1.msra.mxu0 0.0
    %247 = vmatprep.subr.mxu0 0.0
    %248 = vmatpush1.msra.mxu0 0.0
    %249 = vmatprep.subr.mxu0 0.0
    %250 = vmatpush1.msra.mxu0 0.0
    %251 = vmatprep.subr.mxu0 0.0
    %252 = vmatpush1.msra.mxu0 0.0
    %253 = vmatprep.subr.mxu0 0.0
    %254 = vmatpush1.msra.mxu0 0.0
    %255 = vmatprep.subr.mxu0 0.0
    %256 = vmatpush1.msra.mxu0 0.0
    %257 = vmatprep.subr.mxu0 0.0
    %258 = vmatpush1.msra.mxu0 0.0
    %259 = vmatprep.mubr.f32.mxu0 0.0
    %260 = vmatmul.mubr.f32.gmra.mrb[0].mxu0 %v164
    %v261 = vpop.f32.mrb[0].mxu0
    %v262 = vadd.f32 %v193, %v261
    %v263 = vpop.f32.mrb[0].mxu0
    %264 = vmatprep.mubr.f32.mxu0 0.0
    %265 = vmatmul.mubr.f32.gmra.mrb[0].mxu0 %v169
    %v266 = vpop.f32.mrb[0].mxu0
    %v267 = vadd.f32 %v193, %v266
    %v268 = vpop.f32.mrb[0].mxu0
    %269 = vdwg.mxu0
    %v270 = vmax.f32 %v262, 0.0
    %v271 = vmax.f32 %v267, 0.0
    %v272 = vld [vmem:[#allocation8] sm:$0xff]
    %v273 = vld [vmem:[#allocation8 + $0x8] sm:$0xff]
    %v274 = vld [vmem:[#allocation8 + $0x10] sm:$0xff]
    %v275 = vld [vmem:[#allocation8 + $0x18] sm:$0xff]
    %v276 = vld [vmem:[#allocation8 + $0x20] sm:$0xff]
    %v277 = vld [vmem:[#allocation8 + $0x28] sm:$0xff]
    %v278 = vld [vmem:[#allocation8 + $0x30] sm:$0xff]
    %v279 = vld [vmem:[#allocation8 + $0x38] sm:$0xff]
    %v280 = vld [vmem:[#allocation8 + $0x40] sm:$0xff]
    %v281 = vld [vmem:[#allocation8 + $0x48] sm:$0xff]
    %v282 = vld [vmem:[#allocation8 + $0x50] sm:$0xff]
    %v283 = vld [vmem:[#allocation8 + $0x58] sm:$0xff]
    %v284 = vld [vmem:[#allocation8 + $0x60] sm:$0xff]
    %v285 = vld [vmem:[#allocation8 + $0x68] sm:$0xff]
    %v286 = vld [vmem:[#allocation8 + $0x70] sm:$0xff]
    %v287 = vld [vmem:[#allocation8 + $0x78] sm:$0xff]
    %v288 = vld [vmem:[%s5] sm:$0x1]
    %v290 = vlaneseq
    %v291 = vshrl.u32 %v290, 7
    %v292 = vsub.s32 0, %v291
    %v293 = vrot.slane %v288, %v292
    %295 = vmatprep.subr.mxu0 0.0
    %296 = vmatpush1.msra.mxu0 %v272
    %297 = vmatprep.subr.mxu0 0.0
    %298 = vmatpush1.msra.mxu0 %v273
    %299 = vmatprep.subr.mxu0 0.0
    %300 = vmatpush1.msra.mxu0 %v274
    %301 = vmatprep.subr.mxu0 0.0
    %302 = vmatpush1.msra.mxu0 %v275
    %303 = vmatprep.subr.mxu0 0.0
    %304 = vmatpush1.msra.mxu0 %v276
    %305 = vmatprep.subr.mxu0 0.0
    %306 = vmatpush1.msra.mxu0 %v277
    %307 = vmatprep.subr.mxu0 0.0
    %308 = vmatpush1.msra.mxu0 %v278
    %309 = vmatprep.subr.mxu0 0.0
    %310 = vmatpush1.msra.mxu0 %v279
    %311 = vmatprep.subr.mxu0 0.0
    %312 = vmatpush1.msra.mxu0 %v280
    %313 = vmatprep.subr.mxu0 0.0
    %314 = vmatpush1.msra.mxu0 %v281
    %315 = vmatprep.subr.mxu0 0.0
    %316 = vmatpush1.msra.mxu0 %v282
    %317 = vmatprep.subr.mxu0 0.0
    %318 = vmatpush1.msra.mxu0 %v283
    %319 = vmatprep.subr.mxu0 0.0
    %320 = vmatpush1.msra.mxu0 %v284
    %321 = vmatprep.subr.mxu0 0.0
    %322 = vmatpush1.msra.mxu0 %v285
    %323 = vmatprep.subr.mxu0 0.0
    %324 = vmatpush1.msra.mxu0 %v286
    %325 = vmatprep.subr.mxu0 0.0
    %326 = vmatpush1.msra.mxu0 %v287
    %327 = vmatprep.subr.mxu0 0.0
    %328 = vmatpush1.msra.mxu0 0.0
    %329 = vmatprep.subr.mxu0 0.0
    %330 = vmatpush1.msra.mxu0 0.0
    %331 = vmatprep.subr.mxu0 0.0
    %332 = vmatpush1.msra.mxu0 0.0
    %333 = vmatprep.subr.mxu0 0.0
    %334 = vmatpush1.msra.mxu0 0.0
    %335 = vmatprep.subr.mxu0 0.0
    %336 = vmatpush1.msra.mxu0 0.0
    %337 = vmatprep.subr.mxu0 0.0
    %338 = vmatpush1.msra.mxu0 0.0
    %339 = vmatprep.subr.mxu0 0.0
    %340 = vmatpush1.msra.mxu0 0.0
    %341 = vmatprep.subr.mxu0 0.0
    %342 = vmatpush1.msra.mxu0 0.0
    %343 = vmatprep.subr.mxu0 0.0
    %344 = vmatpush1.msra.mxu0 0.0
    %345 = vmatprep.subr.mxu0 0.0
    %346 = vmatpush1.msra.mxu0 0.0
    %347 = vmatprep.subr.mxu0 0.0
    %348 = vmatpush1.msra.mxu0 0.0
    %349 = vmatprep.subr.mxu0 0.0
    %350 = vmatpush1.msra.mxu0 0.0
    %351 = vmatprep.subr.mxu0 0.0
    %352 = vmatpush1.msra.mxu0 0.0
    %353 = vmatprep.subr.mxu0 0.0
    %354 = vmatpush1.msra.mxu0 0.0
    %355 = vmatprep.subr.mxu0 0.0
    %356 = vmatpush1.msra.mxu0 0.0
    %357 = vmatprep.subr.mxu0 0.0
    %358 = vmatpush1.msra.mxu0 0.0
    %359 = vmatprep.mubr.f32.mxu0 0.0
    %360 = vmatmul.mubr.f32.gmra.mrb[0].mxu0 %v270
    %v361 = vpop.f32.mrb[0].mxu0
    %v362 = vadd.f32 %v293, %v361
    %v363 = vpop.f32.mrb[0].mxu0
    %364 = vmatprep.mubr.f32.mxu0 0.0
    %365 = vmatmul.mubr.f32.gmra.mrb[0].mxu0 %v271
    %v366 = vpop.f32.mrb[0].mxu0
    %v367 = vadd.f32 %v293, %v366
    %v368 = vpop.f32.mrb[0].mxu0
    %369 = vdwg.mxu0
    %370 = vmax.xlane.f32.xlu0 %v362
    %v371 = vpop.xlane.xlu0 %370
    %372 = vmax.xlane.f32.xlu0 %v367
    %v373 = vpop.xlane.xlu0 %372
    %v374 = vsub.f32 %v362, %v371
    %v375 = vsub.f32 %v367, %v373
    %v376 = vmul.f32 %v374, 1.442695
    %v377 = vpow.pop %v376
    %v378 = vmul.f32 %v375, 1.442695
    %v379 = vpow.pop %v378
    %380 = vadd.xlane.f32.xlu0 %v377
    %v381 = vpop.xlane.xlu0 %380
    %382 = vadd.xlane.f32.xlu0 %v379
    %v383 = vpop.xlane.xlu0 %382
    %v384 = vmul.f32 %v381, 0.5
    %v385 = vmul.f32 %v383, 0.5
    %v386 = vrcp.pop %v384
    %v387 = vmul.f32 %v377, %v386
    %v388 = vrcp.pop %v385
    %v389 = vmul.f32 %v379, %v388
    %v390 = vlaneseq
    %v391 = vand.u32 %v390, 127
    %vm392 = vcmp.lt.s32.totalorder %v391, 64
    %v393 = vsel %vm392, %v362, %v387
    %v394 = vsel %vm392, %v367, %v389
    %395 = vst [vmem:[#allocation10] sm:$0xff] %v393
    %396 = vst [vmem:[#allocation10 + $0x8] sm:$0xff] %v394
    // Predicated region
    $region42: #{tpu_custom_call.1} parent=1 // pred_check
      _
    $region43: #{tpu_custom_call.1} parent=1 // pred_check_branch
      %398 = sbr.rel (0) target = $region45
    $region44: #{tpu_custom_call.1} parent=1 // pred_region
      %s400 = ssub.s32 256, 256
      %401 = vsyncadd [#allocation4], %s400
      %s402 = sshll.u32 [#allocation10], 4
      %s403 = int_to_ptr.vmem [resolvable:$true] %s402
      %408 = dma.vmem_to_hbm [thread:$0]  %s403, 256, %s6, [#allocation4], 128, 128, 8
    $region45: #{tpu_custom_call.1} parent=1 // pred_fallthru
      _
    // Predicated region
    $region46: #{tpu_custom_call.1} parent=1 // pred_check
      _
    $region47: #{tpu_custom_call.1} parent=1 // pred_check_branch
      %410 = sbr.rel (0) target = $region49
    $region48: #{tpu_custom_call.1} parent=1 // pred_region
      %411 = dma.done [#allocation4], 256
    $region49: #{tpu_custom_call.1} parent=1 // pred_fallthru
      _
    %412 = vsyncpa [#allocation3], 1
    %413 = vsyncpa [#allocation6], 1
    %414 = vsyncpa [#allocation9], 1
    %415 = vsyncpa [#allocation4], 1

</llo_original>
